<compile_context>
chip_gen: v7x
topology: tpu7x:2x2x1
jax: 0.10.0
libtpu: 0.0.40
codegen_flags: <defaults>
</compile_context>

<pallas_src>
import functools

import jax
import jax.numpy as jnp
from jax.experimental import pallas as pl
from jax.experimental.pallas import tpu as pltpu

LANES = 128            # lane width of the flattened sample layout
MAX_BLOCK_ROWS = 2048  # per-grid-step row block (f32 block = 1 MiB at 2048x128)


def _cdiv(a, b):
    return -(-a // b)


def _round_up(a, m):
    return _cdiv(a, m) * m


def _default_num_splits():
    """2 TensorCores on v7x; 1 on v5e/v6e (a size-2 'parallel' axis there is
    just a serial loop that shrinks per-core blocks for zero gain)."""
    try:
        kind = jax.devices()[0].device_kind.lower()
    except Exception:
        return 1
    return 2 if ("v7" in kind or "tpu7" in kind) else 1


def _bce_with_logits(x, y):
    # numerically stable binary_cross_entropy_with_logits, reduction='none'
    # (kept as log(1 + exp(-|x|)); the log1p refinement is a few-ULP nicety)
    return jnp.maximum(x, 0.0) - x * y + jnp.log(1.0 + jnp.exp(-jnp.abs(x)))


# --------------------------------------------------------------------------
# Pallas kernel: per-group / per-lane partial sums.
# Row layout of the (rows_pad, 128) output tile (in order):
#   if compute_loss:              for g < n_train: [loss_g, count_g]
#   if clean_same & compute_loss: for g < n_test : [correct_g]   (counts reused)
#   else:                         for g < n_test : [correct_g, count_g]
# --------------------------------------------------------------------------
def _group_stats_kernel(*refs, n_train, n_test, clean_same, has_weights,
                        compute_loss, block_rows, n_valid, total_samples,
                        rows_pad):
    it = iter(refs)
    x_ref = next(it)
    y_ref = next(it)
    gid_ref = next(it)
    cid_ref = next(it) if not clean_same else None
    w_ref = next(it) if has_weights else None
    out_ref = next(it)

    # out_ref is resident across the "arbitrary" block axis (axis 1):
    @pl.when(pl.program_id(1) == 0)
    def _init():
        out_ref[...] = jnp.zeros_like(out_ref)

    x = x_ref[...].astype(jnp.float32)
    y = y_ref[...].astype(jnp.float32)
    gid = gid_ref[...].astype(jnp.int32)
    lanes = x.shape[1]

    has_pad = n_valid != total_samples
    if has_pad:
        # global sample index = ((c * nblk + b) * block_rows + row) * LANES + lane
        base = (pl.program_id(0) * pl.num_programs(1) + pl.program_id(1)) \
            * (block_rows * LANES)
        ridx = jax.lax.broadcasted_iota(jnp.int32, x.shape, 0)
        lidx = jax.lax.broadcasted_iota(jnp.int32, x.shape, 1)
        valid = (base + ridx * LANES + lidx) < n_valid
        vf = valid.astype(jnp.float32)
    else:
        valid, vf = None, None

    def gsum(v):                        # sublane-only reduce -> (1, LANES)
        return jnp.sum(v, axis=0, keepdims=True)

    def gmask(ids, g):                  # multiplicative f32 group mask
        m = ids == g
        if valid is not None:
            m = jnp.logical_and(m, valid)
        return m.astype(jnp.float32)

    def block_total(v):                 # per-lane total over valid rows
        if v is None:                   # pure count
            return gsum(vf) if has_pad else jnp.full(
                (1, lanes), float(block_rows), jnp.float32)
        return gsum(vf * v) if has_pad else gsum(v)

    # per-sample binary accuracy; equals (pred == y) for y in {0, 1}.
    # TODO(synk): compute_binary_group_acc is not defined in the reference
    #             snippet; standard binary accuracy with pred = (x > 0) assumed.
    correct = jnp.where(x > 0.0, y, 1.0 - y)

    rows = []
    train_masks = []                    # reused for the clean_same correct rows

    if compute_loss:
        ind = _bce_with_logits(x, y)
        if has_weights:
            ind = ind * w_ref[...].astype(jnp.float32)
        loss_rows, cnt_rows = [], []
        # groups 0..n_train-2 explicit; last group by subtraction (every valid
        # sample has gid in [0, n_train), as the torch scatter_add assumes).
        for g in range(n_train - 1):
            mf = gmask(gid, g)
            train_masks.append(mf)
            loss_rows.append(gsum(mf * ind))
            cnt_rows.append(gsum(mf))
        loss_rows.append(block_total(ind) - sum(loss_rows))
        cnt_rows.append(block_total(None) - sum(cnt_rows))
        for lr, cr in zip(loss_rows, cnt_rows):
            rows += [lr, cr]

    if clean_same and compute_loss:
        # correct rows only; test counts == train counts (reused in glue).
        trick = n_test >= n_train       # then ids in [0, n_train) are all covered
        corr_rows = []
        for g in range(n_test - 1 if trick else n_test):
            mf = train_masks[g] if g < len(train_masks) else gmask(gid, g)
            corr_rows.append(gsum(mf * correct))
        if trick:
            corr_rows.append(block_total(correct) - sum(corr_rows))
        rows += corr_rows
    else:
        tid = gid if clean_same else cid_ref[...].astype(jnp.int32)
        trick = (not clean_same) or (n_test >= n_train)
        corr_rows, tcnt_rows = [], []
        for g in range(n_test - 1 if trick else n_test):
            mf = gmask(tid, g)
            corr_rows.append(gsum(mf * correct))
            tcnt_rows.append(gsum(mf))
        if trick:
            corr_rows.append(block_total(correct) - sum(corr_rows))
            tcnt_rows.append(block_total(None) - sum(tcnt_rows))
        for cr, cn in zip(corr_rows, tcnt_rows):
            rows += [cr, cn]

    if len(rows) < rows_pad:
        rows.append(jnp.zeros((rows_pad - len(rows), lanes), jnp.float32))
    out_ref[...] += jnp.concatenate(rows, axis=0)   # unmasked full-tile store
    # TODO(synk): for large group counts (G >= ~16) the per-group reductions
    #             could move onto the MXU via a one-hot matmul.


# --------------------------------------------------------------------------
# Wrapper around pallas_call (tiling, dtype narrowing, padding)
# --------------------------------------------------------------------------
def _choose_tiling(n_samples, num_splits):
    rows_needed = _cdiv(n_samples, LANES)
    if rows_needed < num_splits * 32:          # too small to split across cores
        num_splits = 1
    per_split = _cdiv(rows_needed, num_splits)
    br = min(MAX_BLOCK_ROWS, _round_up(per_split, 32))   # 32: int8 sublane tile
    nblk = _cdiv(per_split, br)
    br = _round_up(_cdiv(per_split, nblk), 32)           # rebalance -> less pad
    total_rows = num_splits * nblk * br
    return num_splits, br, nblk, total_rows


def _prep(a, dtype, total_rows):
    """Narrow/cast only if needed, zero-pad to the tile grid, lay out as
    (rows, LANES). Pad samples are excluded in-kernel via the validity mask."""
    if a.dtype != dtype:
        a = a.astype(dtype)
    pad = total_rows * LANES - a.shape[0]
    if pad:
        a = jnp.pad(a, (0, pad))
    return a.reshape(total_rows, LANES)


def _float_stream_dtype(a):
    return a.dtype if a.dtype in (jnp.bfloat16, jnp.float32) else jnp.float32


def _group_stats(x, y, gid, cid, w, *, n_train, n_test, clean_same,
                 has_weights, compute_loss, num_splits):
    n = x.shape[0]
    num_splits, block_rows, nblk, total_rows = _choose_tiling(n, num_splits)

    id_dt = jnp.int8 if max(n_train, n_test) <= 127 else jnp.int32
    use_w = has_weights and compute_loss

    inputs = [_prep(x, _float_stream_dtype(x), total_rows),
              _prep(y, jnp.bfloat16, total_rows),          # 0/1 labels: exact
              _prep(gid, id_dt, total_rows)]
    if not clean_same:
        inputs.append(_prep(cid, id_dt, total_rows))
    if use_w:
        inputs.append(_prep(w, _float_stream_dtype(w), total_rows))

    n_rows = (2 * n_train if compute_loss else 0) + \
        (n_test if (clean_same and compute_loss) else 2 * n_test)
    rows_pad = _round_up(max(n_rows, 8), 8)

    kernel = functools.partial(
        _group_stats_kernel,
        n_train=n_train, n_test=n_test, clean_same=clean_same,
        has_weights=use_w, compute_loss=compute_loss, block_rows=block_rows,
        n_valid=n, total_samples=total_rows * LANES, rows_pad=rows_pad)

    in_spec = pl.BlockSpec((block_rows, LANES), lambda c, b: (c * nblk + b, 0))
    out_spec = pl.BlockSpec((None, rows_pad, LANES), lambda c, b: (c, 0, 0))

    return pl.pallas_call(
        kernel,
        grid=(num_splits, nblk),
        in_specs=[in_spec] * len(inputs),
        out_specs=out_spec,
        out_shape=jax.ShapeDtypeStruct((num_splits, rows_pad, LANES),
                                       jnp.float32),
        compiler_params=pltpu.CompilerParams(
            dimension_semantics=("parallel", "arbitrary"),
            vmem_limit_bytes=32 * 1024 * 1024),
    )(*inputs)


# --------------------------------------------------------------------------
# Glue (tiny (G,)-sized math), fully fused under jax.jit with the kernel
# --------------------------------------------------------------------------
def _unpack_stats(stats, n_train, n_test, clean_same, compute_loss):
    totals = jnp.sum(stats, axis=(0, 2))     # cores + lanes -> (rows_pad,)
    idx = 0
    group_loss = group_counts = None
    if compute_loss:
        group_loss = totals[0:2 * n_train:2]
        group_counts = totals[1:2 * n_train:2]
        idx = 2 * n_train
    if clean_same and compute_loss:
        group_correct = totals[idx:idx + n_test]
        if n_test <= n_train:
            group_test_counts = group_counts[:n_test]
        else:
            group_test_counts = jnp.concatenate(
                [group_counts, jnp.zeros((n_test - n_train,), jnp.float32)])
    else:
        group_correct = totals[idx:idx + 2 * n_test:2]
        group_test_counts = totals[idx + 1:idx + 2 * n_test:2]
    return group_loss, group_counts, group_correct, group_test_counts


def _update_mw(sum_losses, count_cat, alpha):
    g = sum_losses.shape[0]
    past_frac = count_cat / jnp.sum(count_cat)
    sort_id = jnp.argsort(-sum_losses)                 # descending
    sorted_frac = past_frac[sort_id]
    cumsum = jnp.cumsum(sorted_frac)
    cutoff = jnp.sum((cumsum < alpha).astype(jnp.int32))
    cutoff = jnp.where(cutoff == g, g - 1, cutoff)
    pos = jnp.arange(g)
    h_sorted = jnp.where(pos < cutoff, 1.0 / alpha, 0.1).astype(jnp.float32)
    leftover = 1.0 - jnp.sum(jnp.where(pos < cutoff, sorted_frac, 0.0)) / alpha
    tiebreak = leftover / sorted_frac[cutoff]
    h_sorted = h_sorted.at[cutoff].set(tiebreak.astype(jnp.float32))
    return jnp.zeros((g,), jnp.float32).at[sort_id].set(h_sorted)


@functools.partial(jax.jit, static_argnames=(
    "n_train", "n_test", "clean_same", "has_weights", "alpha", "ema_alpha",
    "num_splits"))
def _forward_train(x, y, group_ids, clean_ids, weights, sum_losses, count_cat,
                   *, n_train, n_test, clean_same, has_weights, alpha,
                   ema_alpha, num_splits):
    stats = _group_stats(x, y, group_ids, clean_ids, weights,
                         n_train=n_train, n_test=n_test, clean_same=clean_same,
                         has_weights=has_weights, compute_loss=True,
                         num_splits=num_splits)
    group_loss, group_counts, group_correct, group_test_counts = _unpack_stats(
        stats, n_train, n_test, clean_same, compute_loss=True)

    acc = group_correct / (group_test_counts + 1e-8)

    reduce_group_losses = group_loss / (group_counts + 1e-8)
    valid = reduce_group_losses != 0          # matches torch .ne(0)
    new_sum_losses = jnp.where(
        valid, sum_losses * (1.0 - ema_alpha) + ema_alpha * reduce_group_losses,
        sum_losses)
    new_count_cat = jnp.where(
        valid, count_cat * (1.0 - 0.05) + 0.05 * group_counts, count_cat)

    h_fun = _update_mw(new_sum_losses, new_count_cat, alpha)

    # mean(ind_loss * h_fun[group_ids]) == dot(h_fun, group_loss) / N
    loss = jnp.dot(h_fun, group_loss) / jnp.float32(x.shape[0])
    return loss, acc, new_sum_losses, new_count_cat, h_fun


@functools.partial(jax.jit, static_argnames=(
    "n_train", "n_test", "clean_same", "num_splits"))
def _forward_eval(x, y, group_ids, clean_ids, *, n_train, n_test, clean_same,
                  num_splits):
    stats = _group_stats(x, y, group_ids, clean_ids, None,
                         n_train=n_train, n_test=n_test, clean_same=clean_same,
                         has_weights=False, compute_loss=False,
                         num_splits=num_splits)
    _, _, group_correct, group_test_counts = _unpack_stats(
        stats, n_train, n_test, clean_same, compute_loss=False)
    return group_correct / (group_test_counts + 1e-8)


# --------------------------------------------------------------------------
# Module (buffers / training flag are Python-side state around pure jit fns)
# --------------------------------------------------------------------------
class GreedyGroupDRO:
    def __init__(self, alpha=0.2, train_groups=2, test_groups=2,
                 num_splits=None):
        self.n_train_groups = int(train_groups)
        self.n_test_groups = int(test_groups)
        self.EMA_alpha = 0.1
        self.alpha = float(alpha)
        self.h_fun = jnp.ones((self.n_train_groups,), jnp.float32)
        self.sum_losses = jnp.zeros((self.n_train_groups,), jnp.float32)
        self.count_cat = jnp.ones((self.n_train_groups,), jnp.float32)
        self.training = True
        self.num_splits = (_default_num_splits() if num_splits is None
                           else int(num_splits))

    def forward(self, x, y, group_ids, clean_ids=None, weights=None):
        x = jnp.ravel(x)
        y = jnp.ravel(y)
        group_ids = jnp.ravel(group_ids)
        clean_same = clean_ids is None
        has_weights = weights is not None
        if not clean_same:
            clean_ids = jnp.ravel(clean_ids)
        if has_weights:
            weights = jnp.ravel(weights)

        if not self.training:
            return _forward_eval(
                x, y, group_ids, clean_ids,
                n_train=self.n_train_groups, n_test=self.n_test_groups,
                clean_same=clean_same, num_splits=self.num_splits)

        loss, acc, sl, cc, h = _forward_train(
            x, y, group_ids, clean_ids, weights,
            self.sum_losses, self.count_cat,
            n_train=self.n_train_groups, n_test=self.n_test_groups,
            clean_same=clean_same, has_weights=has_weights,
            alpha=self.alpha, ema_alpha=self.EMA_alpha,
            num_splits=self.num_splits)
        self.sum_losses, self.count_cat, self.h_fun = sl, cc, h
        return loss, acc

    __call__ = forward


# --------------------------------------------------------------------------
# Pure-JAX reference of the train forward (correctness cross-check)
# --------------------------------------------------------------------------
def _reference_train(x, y, gid, cid, w, sum_losses, count_cat,
                     n_train, n_test, alpha, ema):
    ind = _bce_with_logits(x, y)
    if w is not None:
        ind = ind * w
    pred = (x > 0.0).astype(jnp.float32)
    correct = (pred == y).astype(jnp.float32)
    gl = jnp.zeros((n_train,), jnp.float32).at[gid].add(ind)
    gc = jnp.zeros((n_train,), jnp.float32).at[gid].add(1.0)
    corr = jnp.zeros((n_test,), jnp.float32).at[cid].add(correct)
    tcnt = jnp.zeros((n_test,), jnp.float32).at[cid].add(1.0)
    acc = corr / (tcnt + 1e-8)
    rgl = gl / (gc + 1e-8)
    valid = rgl != 0
    sl = jnp.where(valid, sum_losses * (1 - ema) + ema * rgl, sum_losses)
    cc = jnp.where(valid, count_cat * 0.95 + 0.05 * gc, count_cat)
    h = _update_mw(sl, cc, alpha)
    loss = jnp.dot(h, gl) / x.shape[0]
    return loss, acc, sl, cc


# --------------------------------------------------------------------------
if __name__ == "__main__":
    key = jax.random.PRNGKey(0)

    def make_batch(k, n):
        kx, ky, kg, kc, kw = jax.random.split(k, 5)
        x = jax.random.normal(kx, (n,), jnp.float32)                       # logits
        y = (jax.random.uniform(ky, (n,)) > 0.5).astype(jnp.float32)       # labels
        gid = jax.random.randint(kg, (n,), 0, 2).astype(jnp.int32)         # train groups
        cid = jax.random.randint(kc, (n,), 0, 2).astype(jnp.int32)         # test groups
        w = (jax.random.uniform(kw, (n,)) + 0.5).astype(jnp.float32)       # weights
        return x, y, gid, cid, w

    def check(a, b, name):
        assert jnp.allclose(a, b, rtol=1e-3, atol=1e-5), (name, a, b)

    k1, k2 = jax.random.split(key)
    mod = GreedyGroupDRO(alpha=0.2, train_groups=2, test_groups=2)
    sl_ref = jnp.zeros((2,), jnp.float32)
    cc_ref = jnp.ones((2,), jnp.float32)

    # 1) aligned batch, clean_ids=None, with weights (no padding needed)
    x, y, gid, cid, w = make_batch(k1, 4096)
    loss, acc = mod.forward(x, y, gid, clean_ids=None, weights=w)
    jax.block_until_ready((loss, acc))
    loss_r, acc_r, sl_ref, cc_ref = _reference_train(
        x, y, gid, gid, w, sl_ref, cc_ref, 2, 2, 0.2, 0.1)
    check(loss, loss_r, "loss1"); check(acc, acc_r, "acc1")

    # 2) aligned batch, explicit clean_ids, no weights (w stream dropped)
    loss2, acc2 = mod.forward(x, y, gid, clean_ids=cid)
    jax.block_until_ready((loss2, acc2))
    loss2_r, acc2_r, sl_ref, cc_ref = _reference_train(
        x, y, gid, cid, None, sl_ref, cc_ref, 2, 2, 0.2, 0.1)
    check(loss2, loss2_r, "loss2"); check(acc2, acc2_r, "acc2")

    # 3) unaligned batch: exercises zero-padding + in-kernel validity mask and
    #    the multi-block accumulate path (nblk > 1)
    x3, y3, gid3, cid3, w3 = make_batch(k2, 300000)
    loss3, acc3 = mod.forward(x3, y3, gid3, clean_ids=None, weights=w3)
    jax.block_until_ready((loss3, acc3))
    loss3_r, acc3_r, sl_ref, cc_ref = _reference_train(
        x3, y3, gid3, gid3, w3, sl_ref, cc_ref, 2, 2, 0.2, 0.1)
    check(loss3, loss3_r, "loss3"); check(acc3, acc3_r, "acc3")

    # 4) eval path: per-test-group accuracy only, no buffer update, no loss rows
    mod.training = False
    acc_eval = mod.forward(x, y, gid)
    jax.block_until_ready(acc_eval)
    check(acc_eval, acc_r, "acc_eval")

    print("KERNEL_OK")
</pallas_src>

<mosaic_0001>
module attributes {stable_mosaic.version = 11 : i64} {
  func.func @_group_stats_kernel(%arg0: i32, %arg1: i32, %arg2: memref<32x128xf32, #tpu.memory_space<vmem>>, %arg3: memref<32x128xbf16, #tpu.memory_space<vmem>>, %arg4: memref<32x128xi8, #tpu.memory_space<vmem>>, %arg5: memref<32x128xf32, #tpu.memory_space<vmem>>, %arg6: memref<1x8x128xf32, #tpu.memory_space<vmem>>) attributes {dimension_semantics = [#tpu.dimension_semantics<parallel>, #tpu.dimension_semantics<arbitrary>], iteration_bounds = array<i64: 1, 1>, scalar_prefetch = 0 : i64, scratch_operands = 0 : i64, tpu.core_type = #tpu.core_type<tc>, window_params = [{transform_indices = @transform_0, window_bounds = array<i64: 32, 128>}, {transform_indices = @transform_1, window_bounds = array<i64: 32, 128>}, {transform_indices = @transform_2, window_bounds = array<i64: 32, 128>}, {transform_indices = @transform_3, window_bounds = array<i64: 32, 128>}, {transform_indices = @transform_4, window_bounds = array<i64: 1, 8, 128>}]} {
    %c0_i32 = arith.constant 0 : i32
    %0 = arith.cmpi eq, %arg1, %c0_i32 : i32
    %1 = arith.extui %0 : i1 to i32
    %c0_i32_0 = arith.constant 0 : i32
    %2 = arith.cmpi ne, %1, %c0_i32_0 : i32
    scf.if %2 {
      %cst_29 = arith.constant 0.000000e+00 : f32
      %61 = vector.broadcast %cst_29 : f32 to vector<8x128xf32>
      %c0_30 = arith.constant 0 : index
      %c0_31 = arith.constant 0 : index
      %c0_32 = arith.constant 0 : index
      %62 = vector.load %arg6[%c0_30, %c0_31, %c0_32] : memref<1x8x128xf32, #tpu.memory_space<vmem>>, vector<1x8x128xf32>
      %63 = vector.shape_cast %62 : vector<1x8x128xf32> to vector<8x128xf32>
      %64 = vector.shape_cast %61 : vector<8x128xf32> to vector<1x8x128xf32>
      tpu.vector_store %arg6[%c0_30, %c0_31, %c0_32], %64 {strides = array<i32>} : memref<1x8x128xf32, #tpu.memory_space<vmem>>, vector<1x8x128xf32>,
    } else {
    }
    %c0 = arith.constant 0 : index
    %c0_1 = arith.constant 0 : index
    %3 = vector.load %arg2[%c0, %c0_1] : memref<32x128xf32, #tpu.memory_space<vmem>>, vector<32x128xf32>
    %c0_2 = arith.constant 0 : index
    %c0_3 = arith.constant 0 : index
    %4 = vector.load %arg3[%c0_2, %c0_3] : memref<32x128xbf16, #tpu.memory_space<vmem>>, vector<32x128xbf16>
    %5 = arith.extf %4 : vector<32x128xbf16> to vector<32x128xf32>
    %c0_4 = arith.constant 0 : index
    %c0_5 = arith.constant 0 : index
    %6 = vector.load %arg4[%c0_4, %c0_5] : memref<32x128xi8, #tpu.memory_space<vmem>>, vector<32x128xi8>
    %7 = arith.extsi %6 : vector<32x128xi8> to vector<32x128xi32>
    %cst = arith.constant 0.000000e+00 : f32
    %8 = vector.broadcast %cst : f32 to vector<32x128xf32>
    %9 = arith.cmpf ogt, %3, %8 : vector<32x128xf32>
    %cst_6 = arith.constant 1.000000e+00 : f32
    %10 = vector.broadcast %cst_6 : f32 to vector<32x128xf32>
    %11 = arith.subf %10, %5 : vector<32x128xf32>
    %12 = arith.select %9, %5, %11 : vector<32x128xi1>, vector<32x128xf32>
    %cst_7 = arith.constant 0.000000e+00 : f32
    %13 = vector.broadcast %cst_7 : f32 to vector<32x128xf32>
    %14 = arith.maximumf %3, %13 : vector<32x128xf32>
    %15 = arith.mulf %3, %5 : vector<32x128xf32>
    %16 = arith.subf %14, %15 : vector<32x128xf32>
    %17 = math.absf %3 : vector<32x128xf32>
    %cst_8 = arith.constant 0.000000e+00 : f32
    %18 = vector.broadcast %cst_8 : f32 to vector<32x128xf32>
    %19 = arith.subf %18, %17 : vector<32x128xf32>
    %20 = math.exp %19 : vector<32x128xf32>
    %cst_9 = arith.constant 1.000000e+00 : f32
    %21 = vector.broadcast %cst_9 : f32 to vector<32x128xf32>
    %22 = arith.addf %21, %20 : vector<32x128xf32>
    %23 = math.log %22 : vector<32x128xf32>
    %24 = arith.addf %16, %23 : vector<32x128xf32>
    %c0_10 = arith.constant 0 : index
    %c0_11 = arith.constant 0 : index
    %25 = vector.load %arg5[%c0_10, %c0_11] : memref<32x128xf32, #tpu.memory_space<vmem>>, vector<32x128xf32>
    %26 = arith.mulf %24, %25 : vector<32x128xf32>
    %c0_i32_12 = arith.constant 0 : i32
    %27 = vector.broadcast %c0_i32_12 : i32 to vector<32x128xi32>
    %28 = arith.cmpi eq, %7, %27 : vector<32x128xi32>
    %29 = arith.extui %28 : vector<32x128xi1> to vector<32x128xi32>
    %30 = arith.sitofp %29 : vector<32x128xi32> to vector<32x128xf32>
    %31 = arith.mulf %30, %26 : vector<32x128xf32>
    %cst_13 = arith.constant dense<0.000000e+00> : vector<128xf32>
    %32 = vector.multi_reduction <add>, %31, %cst_13 [0] : vector<32x128xf32> to vector<128xf32>
    %33 = vector.shape_cast %32 : vector<128xf32> to vector<1x128xf32>
    %cst_14 = arith.constant dense<0.000000e+00> : vector<128xf32>
    %34 = vector.multi_reduction <add>, %30, %cst_14 [0] : vector<32x128xf32> to vector<128xf32>
    %35 = vector.shape_cast %34 : vector<128xf32> to vector<1x128xf32>
    %cst_15 = arith.constant dense<0.000000e+00> : vector<128xf32>
    %36 = vector.multi_reduction <add>, %26, %cst_15 [0] : vector<32x128xf32> to vector<128xf32>
    %37 = vector.shape_cast %36 : vector<128xf32> to vector<1x128xf32>
    %cst_16 = arith.constant 0.000000e+00 : f32
    %38 = vector.broadcast %cst_16 : f32 to vector<1x128xf32>
    %39 = arith.addf %38, %33 : vector<1x128xf32>
    %40 = arith.subf %37, %39 : vector<1x128xf32>
    %cst_17 = arith.constant 3.200000e+01 : f32
    %41 = vector.broadcast %cst_17 : f32 to vector<1x128xf32>
    %cst_18 = arith.constant 0.000000e+00 : f32
    %42 = vector.broadcast %cst_18 : f32 to vector<1x128xf32>
    %43 = arith.addf %42, %35 : vector<1x128xf32>
    %44 = arith.subf %41, %43 : vector<1x128xf32>
    %45 = arith.mulf %30, %12 : vector<32x128xf32>
    %cst_19 = arith.constant dense<0.000000e+00> : vector<128xf32>
    %46 = vector.multi_reduction <add>, %45, %cst_19 [0] : vector<32x128xf32> to vector<128xf32>
    %47 = vector.shape_cast %46 : vector<128xf32> to vector<1x128xf32>
    %cst_20 = arith.constant dense<0.000000e+00> : vector<128xf32>
    %48 = vector.multi_reduction <add>, %12, %cst_20 [0] : vector<32x128xf32> to vector<128xf32>
    %49 = vector.shape_cast %48 : vector<128xf32> to vector<1x128xf32>
    %cst_21 = arith.constant 0.000000e+00 : f32
    %50 = vector.broadcast %cst_21 : f32 to vector<1x128xf32>
    %51 = arith.addf %50, %47 : vector<1x128xf32>
    %52 = arith.subf %49, %51 : vector<1x128xf32>
    %cst_22 = arith.constant 0.000000e+00 : f32
    %53 = vector.broadcast %cst_22 : f32 to vector<2x128xf32>
    %c0_23 = arith.constant 0 : index
    %c0_24 = arith.constant 0 : index
    %c0_25 = arith.constant 0 : index
    %54 = vector.load %arg6[%c0_23, %c0_24, %c0_25] : memref<1x8x128xf32, #tpu.memory_space<vmem>>, vector<1x8x128xf32>
    %55 = vector.shape_cast %54 : vector<1x8x128xf32> to vector<8x128xf32>
    %56 = tpu.concatenate %33, %35, %40, %44, %47, %52, %53 in 0 : vector<1x128xf32>, vector<1x128xf32>, vector<1x128xf32>, vector<1x128xf32>, vector<1x128xf32>, vector<1x128xf32>, vector<2x128xf32> -> vector<8x128xf32>
    %57 = arith.addf %55, %56 : vector<8x128xf32>
    %c0_26 = arith.constant 0 : index
    %c0_27 = arith.constant 0 : index
    %c0_28 = arith.constant 0 : index
    %58 = vector.load %arg6[%c0_26, %c0_27, %c0_28] : memref<1x8x128xf32, #tpu.memory_space<vmem>>, vector<1x8x128xf32>
    %59 = vector.shape_cast %58 : vector<1x8x128xf32> to vector<8x128xf32>
    %60 = vector.shape_cast %57 : vector<8x128xf32> to vector<1x8x128xf32>
    tpu.vector_store %arg6[%c0_26, %c0_27, %c0_28], %60 {strides = array<i32>} : memref<1x8x128xf32, #tpu.memory_space<vmem>>, vector<1x8x128xf32>,
    return
  }
  func.func @transform_0(%arg0: i32, %arg1: i32) -> (i32, i32) {
    %c1_i32 = arith.constant 1 : i32
    %0 = arith.muli %arg0, %c1_i32 : i32
    %1 = arith.addi %0, %arg1 : i32
    %c0_i32 = arith.constant 0 : i32
    %c0_i32_0 = arith.constant 0 : i32
    return %1, %c0_i32 : i32, i32
  }
  func.func @transform_1(%arg0: i32, %arg1: i32) -> (i32, i32) {
    %c1_i32 = arith.constant 1 : i32
    %0 = arith.muli %arg0, %c1_i32 : i32
    %1 = arith.addi %0, %arg1 : i32
    %c0_i32 = arith.constant 0 : i32
    %c0_i32_0 = arith.constant 0 : i32
    return %1, %c0_i32 : i32, i32
  }
  func.func @transform_2(%arg0: i32, %arg1: i32) -> (i32, i32) {
    %c1_i32 = arith.constant 1 : i32
    %0 = arith.muli %arg0, %c1_i32 : i32
    %1 = arith.addi %0, %arg1 : i32
    %c0_i32 = arith.constant 0 : i32
    %c0_i32_0 = arith.constant 0 : i32
    return %1, %c0_i32 : i32, i32
  }
  func.func @transform_3(%arg0: i32, %arg1: i32) -> (i32, i32) {
    %c1_i32 = arith.constant 1 : i32
    %0 = arith.muli %arg0, %c1_i32 : i32
    %1 = arith.addi %0, %arg1 : i32
    %c0_i32 = arith.constant 0 : i32
    %c0_i32_0 = arith.constant 0 : i32
    return %1, %c0_i32 : i32, i32
  }
  func.func @transform_4(%arg0: i32, %arg1: i32) -> (i32, i32, i32) {
    %c0_i32 = arith.constant 0 : i32
    %c0_i32_0 = arith.constant 0 : i32
    %c0_i32_1 = arith.constant 0 : i32
    return %arg0, %c0_i32, %c0_i32_0 : i32, i32, i32
  }
}

</mosaic_0001>

<llo_original>
// kernel: _forward_train.1
$region0: #{_forward_train.1}
  #allocation0 [shape = 'u32[]', space=smem, size = 0x4, offset = 0x4, fixed_abs, tag = 'smem constant byte address 0x4 - core index']
  #allocation1 [shape = 'u32[144,128]{1,0:T(1,128)}', space=vmem, size = 0x12000, scoped, tag = 'internal scratch']
  %s0 = inlined_call_operand.vmem [shape: f32[32,128], index: 0, kind: input, shape index: {}]
  %s1 = inlined_call_operand.vmem [shape: bf16[32,128], index: 1, kind: input, shape index: {}]
  %s2 = inlined_call_operand.vmem [shape: s8[32,128], index: 2, kind: input, shape index: {}]
  %s3 = inlined_call_operand.vmem [shape: f32[32,128], index: 3, kind: input, shape index: {}]
  %s4 = inlined_call_operand.vmem [shape: f32[1,8,128], index: 4, kind: output, shape index: {}]
  %s5 = sld [smem:[#allocation0]]
  $region30: #{_forward_train.1} parent=0
    _
  %s7 = ssub.s32 1, %s5
  %s8 = scalar_select 0, %s7, %s5
  // Predicated region
  $region2: #{_forward_train.1} parent=0 // pred_check
    _
  $region3: #{_forward_train.1} parent=0 // pred_check_branch
    %10 = sbr.rel (0) target = $region5
  $region4: #{_forward_train.1} parent=0 // pred_region
    %s11 = sadd.s32 0, 0
    %s12 = smul.u32 4, %s11
    %p13 = scmp.lt.s32.totalorder %s12, 3
    %s14 = scalar_select %p13, %s12, 3
    %s15 = smul.addr %s14, 8
    %s16 = scalar_lea.vmem %s0, %s15
    %s17 = sadd.s32 0, 0
    %s18 = smul.u32 4, %s17
  $region5: #{_forward_train.1} parent=0 // pred_fallthru
    _
  // Predicated region
  $region6: #{_forward_train.1} parent=0 // pred_check
    _
  $region7: #{_forward_train.1} parent=0 // pred_check_branch
    %20 = sbr.rel (0) target = $region9
  $region8: #{_forward_train.1} parent=0 // pred_region
    %s21 = sadd.s32 0, 0
    %s22 = smul.u32 4, %s21
    %p23 = scmp.lt.s32.totalorder %s22, 3
    %s24 = scalar_select %p23, %s22, 3
    %s25 = smul.addr %s24, 4
    %s26 = scalar_lea.vmem %s1, %s25
    %s27 = sadd.s32 0, 0
    %s28 = smul.u32 4, %s27
  $region9: #{_forward_train.1} parent=0 // pred_fallthru
    _
  // Predicated region
  $region10: #{_forward_train.1} parent=0 // pred_check
    _
  $region11: #{_forward_train.1} parent=0 // pred_check_branch
    %30 = sbr.rel (0) target = $region13
  $region12: #{_forward_train.1} parent=0 // pred_region
    %s31 = sadd.s32 0, 0
    %p32 = scmp.lt.s32.totalorder %s31, 0
    %s33 = scalar_select %p32, %s31, 0
    %s34 = smul.addr %s33, 8
    %s35 = scalar_lea.vmem %s2, %s34
    %s36 = sadd.s32 0, 0
  $region13: #{_forward_train.1} parent=0 // pred_fallthru
    _
  // Predicated region
  $region14: #{_forward_train.1} parent=0 // pred_check
    _
  $region15: #{_forward_train.1} parent=0 // pred_check_branch
    %38 = sbr.rel (0) target = $region17
  $region16: #{_forward_train.1} parent=0 // pred_region
    %s39 = sadd.s32 0, 0
    %s40 = smul.u32 4, %s39
    %p41 = scmp.lt.s32.totalorder %s40, 3
    %s42 = scalar_select %p41, %s40, 3
    %s43 = smul.addr %s42, 8
    %s44 = scalar_lea.vmem %s3, %s43
    %s45 = sadd.s32 0, 0
    %s46 = smul.u32 4, %s45
  $region17: #{_forward_train.1} parent=0 // pred_fallthru
    _
  %s47 = sadd.s32 0, 0
  %s48 = smul.u32 4, %s47
  %p49 = scmp.lt.s32.totalorder %s48, 3
  %s50 = scalar_select %p49, %s48, 3
  %s51 = smul.addr %s50, 8
  %s52 = scalar_lea.vmem %s0, %s51
  %s53 = sadd.s32 0, 0
  %s54 = smul.u32 4, %s53
  %p55 = scmp.lt.s32.totalorder %s54, 3
  %s56 = scalar_select %p55, %s54, 3
  %s57 = smul.addr %s56, 4
  %s58 = scalar_lea.vmem %s1, %s57
  %s59 = sadd.s32 0, 0
  %p60 = scmp.lt.s32.totalorder %s59, 0
  %s61 = scalar_select %p60, %s59, 0
  %s62 = smul.addr %s61, 8
  %s63 = scalar_lea.vmem %s2, %s62
  %s64 = sadd.s32 0, 0
  %s65 = smul.u32 4, %s64
  %p66 = scmp.lt.s32.totalorder %s65, 3
  %s67 = scalar_select %p66, %s65, 3
  %s68 = smul.addr %s67, 8
  %s69 = scalar_lea.vmem %s3, %s68
  %s70 = sadd.s32 0, 0
  %s71 = smul.u32 4, %s70
  %p72 = scmp.lt.s32.totalorder %s71, 3
  %s73 = scalar_select %p72, %s71, 3
  %s74 = smul.addr %s73, 8
  %s75 = scalar_lea.vmem %s0, %s74
  %s76 = sadd.s32 0, 0
  %s77 = smul.u32 4, %s76
  %s78 = sadd.s32 0, 0
  %s79 = smul.u32 4, %s78
  %p80 = scmp.lt.s32.totalorder %s79, 3
  %s81 = scalar_select %p80, %s79, 3
  %s82 = smul.addr %s81, 4
  %s83 = scalar_lea.vmem %s1, %s82
  %s84 = sadd.s32 0, 0
  %s85 = smul.u32 4, %s84
  %s86 = sadd.s32 0, 0
  %p87 = scmp.lt.s32.totalorder %s86, 0
  %s88 = scalar_select %p87, %s86, 0
  %s89 = smul.addr %s88, 8
  %s90 = scalar_lea.vmem %s2, %s89
  %s91 = sadd.s32 0, 0
  %s92 = sadd.s32 0, 0
  %s93 = smul.u32 4, %s92
  %p94 = scmp.lt.s32.totalorder %s93, 3
  %s95 = scalar_select %p94, %s93, 3
  %s96 = smul.addr %s95, 8
  %s97 = scalar_lea.vmem %s3, %s96
  %s98 = sadd.s32 0, 0
  %s99 = smul.u32 4, %s98
  %p100 = scmp.eq.s32.totalorder 0, 0
  // Predicated region
  $region18: #{_forward_train.1} parent=0 // pred_check
    %p101 = pneg %p100
  $region19: #{_forward_train.1} parent=0 // pred_check_branch
    %103 = sbr.rel (%p101) target = $region21
  $region20: #{_forward_train.1} parent=0 // pred_region
    %104 = vst [vmem:[%s4] sm:$0xff] 0.0
  $region21: #{_forward_train.1} parent=0 // pred_fallthru
    _
  %v105 = vld [vmem:[%s75] sm:$0xff]
  %v106 = vld [vmem:[%s75 + $0x8] sm:$0xff]
  %v107 = vld [vmem:[%s75 + $0x10] sm:$0xff]
  %v108 = vld [vmem:[%s75 + $0x18] sm:$0xff]
  %v109 = vld [vmem:[%s83] sm:$0xf]
  %v110 = vld [vmem:[%s83 + $0x4] sm:$0xf]
  %v111 = vld [vmem:[%s83 + $0x8] sm:$0xf]
  %v112 = vld [vmem:[%s83 + $0xc] sm:$0xf]
  %v113 = vunpack.c.l.bf16 %v109
  %v114 = vunpack.c.l.bf16 %v110
  %v115 = vunpack.c.l.bf16 %v111
  %v116 = vunpack.c.l.bf16 %v112
  %v117 = vld [vmem:[%s90] sm:$0xff]
  %v118 = vunpack.c.0.s8 %v117
  %v119 = vunpack.c.1.s8 %v117
  %v120 = vunpack.c.2.s8 %v117
  %v121 = vunpack.c.3.s8 %v117
  %vm122 = vcmp.gt.f32.partialorder %v105, 0.0
  %vm123 = vcmp.gt.f32.partialorder %v106, 0.0
  %vm124 = vcmp.gt.f32.partialorder %v107, 0.0
  %vm125 = vcmp.gt.f32.partialorder %v108, 0.0
  %v126 = vsub.f32 1.0, %v113
  %v127 = vsub.f32 1.0, %v114
  %v128 = vsub.f32 1.0, %v115
  %v129 = vsub.f32 1.0, %v116
  %v130 = vsel %vm122, %v113, %v126
  %v131 = vsel %vm123, %v114, %v127
  %v132 = vsel %vm124, %v115, %v128
  %v133 = vsel %vm125, %v116, %v129
  %v134 = vmax.f32 %v105, 0.0
  %v135 = vmax.f32 %v106, 0.0
  %v136 = vmax.f32 %v107, 0.0
  %v137 = vmax.f32 %v108, 0.0
  %v138 = vmul.f32 %v105, %v113
  %v139 = vmul.f32 %v106, %v114
  %v140 = vmul.f32 %v107, %v115
  %v141 = vmul.f32 %v108, %v116
  %v142 = vsub.f32 %v134, %v138
  %v143 = vsub.f32 %v135, %v139
  %v144 = vsub.f32 %v136, %v140
  %v145 = vsub.f32 %v137, %v141
  %v146 = vand.u32 2147483647, %v105
  %v147 = vand.u32 2147483647, %v106
  %v148 = vand.u32 2147483647, %v107
  %v149 = vand.u32 2147483647, %v108
  %v150 = vsub.f32 0.0, %v146
  %v151 = vsub.f32 0.0, %v147
  %v152 = vsub.f32 0.0, %v148
  %v153 = vsub.f32 0.0, %v149
  %v154 = vmul.f32 %v150, 1.442695
  %v155 = vpow.pop %v154
  %v156 = vmul.f32 %v151, 1.442695
  %v157 = vpow.pop %v156
  %v158 = vmul.f32 %v152, 1.442695
  %v159 = vpow.pop %v158
  %v160 = vmul.f32 %v153, 1.442695
  %v161 = vpow.pop %v160
  %v162 = vadd.f32 %v155, 1.0
  %v163 = vadd.f32 %v157, 1.0
  %v164 = vadd.f32 %v159, 1.0
  %v165 = vadd.f32 %v161, 1.0
  %v166 = vlog2.pop %v162
  %v167 = vmul.f32 %v166, 0.6931472
  %v168 = vlog2.pop %v163
  %v169 = vmul.f32 %v168, 0.6931472
  %v170 = vlog2.pop %v164
  %v171 = vmul.f32 %v170, 0.6931472
  %v172 = vlog2.pop %v165
  %v173 = vmul.f32 %v172, 0.6931472
  %v174 = vadd.f32 %v142, %v167
  %v175 = vadd.f32 %v143, %v169
  %v176 = vadd.f32 %v144, %v171
  %v177 = vadd.f32 %v145, %v173
  %v178 = vld [vmem:[%s97] sm:$0xff]
  %v179 = vld [vmem:[%s97 + $0x8] sm:$0xff]
  %v180 = vld [vmem:[%s97 + $0x10] sm:$0xff]
  %v181 = vld [vmem:[%s97 + $0x18] sm:$0xff]
  %v182 = vmul.f32 %v174, %v178
  %v183 = vmul.f32 %v175, %v179
  %v184 = vmul.f32 %v176, %v180
  %v185 = vmul.f32 %v177, %v181
  %vm186 = vcmp.eq.s32.totalorder %v118, 0
  %vm187 = vcmp.eq.s32.totalorder %v119, 0
  %vm188 = vcmp.eq.s32.totalorder %v120, 0
  %vm189 = vcmp.eq.s32.totalorder %v121, 0
  %v190 = vsel %vm186, 1, 0
  %v191 = vsel %vm187, 1, 0
  %v192 = vsel %vm188, 1, 0
  %v193 = vsel %vm189, 1, 0
  %v194 = vcvt.s32.f32 %v190
  %v195 = vcvt.s32.f32 %v191
  %v196 = vcvt.s32.f32 %v192
  %v197 = vcvt.s32.f32 %v193
  %v198 = vmul.f32 %v194, %v182
  %v199 = vmul.f32 %v195, %v183
  %v200 = vmul.f32 %v196, %v184
  %v201 = vmul.f32 %v197, %v185
  %v202 = vadd.f32 %v198, %v199
  %v203 = vadd.f32 %v202, %v200
  %v204 = vadd.f32 %v203, %v201
  %v205 = vrot.slane %v204, 4
  %v206 = vadd.f32 %v204, %v205
  %v207 = vrot.slane %v206, 2
  %v208 = vadd.f32 %v206, %v207
  %v209 = vrot.slane %v208, 1
  %v210 = vadd.f32 %v208, %v209
  %v211 = vadd.f32 %v194, %v195
  %v212 = vadd.f32 %v211, %v196
  %v213 = vadd.f32 %v212, %v197
  %v214 = vrot.slane %v213, 4
  %v215 = vadd.f32 %v213, %v214
  %v216 = vrot.slane %v215, 2
  %v217 = vadd.f32 %v215, %v216
  %v218 = vrot.slane %v217, 1
  %v219 = vadd.f32 %v217, %v218
  %v220 = vadd.f32 %v182, %v183
  %v221 = vadd.f32 %v220, %v184
  %v222 = vadd.f32 %v221, %v185
  %v223 = vrot.slane %v222, 4
  %v224 = vadd.f32 %v222, %v223
  %v225 = vrot.slane %v224, 2
  %v226 = vadd.f32 %v224, %v225
  %v227 = vrot.slane %v226, 1
  %v228 = vadd.f32 %v226, %v227
  %v229 = vadd.f32 %v210, 0.0
  %v230 = vsub.f32 %v228, %v229
  %v231 = vadd.f32 %v219, 0.0
  %v232 = vsub.f32 32.0, %v231
  %v233 = vmul.f32 %v194, %v130
  %v234 = vmul.f32 %v195, %v131
  %v235 = vmul.f32 %v196, %v132
  %v236 = vmul.f32 %v197, %v133
  %v237 = vadd.f32 %v233, %v234
  %v238 = vadd.f32 %v237, %v235
  %v239 = vadd.f32 %v238, %v236
  %v240 = vrot.slane %v239, 4
  %v241 = vadd.f32 %v239, %v240
  %v242 = vrot.slane %v241, 2
  %v243 = vadd.f32 %v241, %v242
  %v244 = vrot.slane %v243, 1
  %v245 = vadd.f32 %v243, %v244
  %v246 = vadd.f32 %v130, %v131
  %v247 = vadd.f32 %v246, %v132
  %v248 = vadd.f32 %v247, %v133
  %v249 = vrot.slane %v248, 4
  %v250 = vadd.f32 %v248, %v249
  %v251 = vrot.slane %v250, 2
  %v252 = vadd.f32 %v250, %v251
  %v253 = vrot.slane %v252, 1
  %v254 = vadd.f32 %v252, %v253
  %v255 = vadd.f32 %v245, 0.0
  %v256 = vsub.f32 %v254, %v255
  %v257 = vld [vmem:[%s4] sm:$0xff]
  %vm258 = vcmask 1040384
  %v259 = vsel %vm258, %v210, %v219
  %vm260 = vcmask 1041408
  %v261 = vsel %vm260, %v259, %v230
  %vm262 = vcmask 1042432
  %v263 = vsel %vm262, %v261, %v232
  %vm264 = vcmask 1043456
  %v265 = vsel %vm264, %v263, %v245
  %vm266 = vcmask 1044480
  %v267 = vsel %vm266, %v265, %v256
  %vm268 = vcmask 1045504
  %v269 = vsel %vm268, %v267, 0.0
  %v270 = vadd.f32 %v257, %v269
  %271 = vst [vmem:[%s4] sm:$0xff] %v270
  // Predicated region
  $region22: #{_forward_train.1} parent=0 // pred_check
    _
  $region23: #{_forward_train.1} parent=0 // pred_check_branch
    %273 = sbr.rel (0) target = $region25
  $region24: #{_forward_train.1} parent=0 // pred_region
    _
  $region25: #{_forward_train.1} parent=0 // pred_fallthru
    _
  // Predicated region
  $region26: #{_forward_train.1} parent=0 // pred_check
    _
  $region27: #{_forward_train.1} parent=0 // pred_check_branch
    %275 = sbr.rel (0) target = $region29
  $region28: #{_forward_train.1} parent=0 // pred_region
    _
  $region29: #{_forward_train.1} parent=0 // pred_fallthru
    _

</llo_original>
